<compile_context>
chip_gen: v7x
topology: tpu7x:2x2x1
jax: 0.10.0
libtpu: 0.0.40
codegen_flags: <defaults>
</compile_context>

<pallas_src>
import functools
import math

import jax
import jax.numpy as jnp
from jax import lax
from jax.experimental import pallas as pl
from jax.experimental.pallas import tpu as pltpu

TEMPERATURE = 0.1
LARGE_NUM = 1000000000.0        # torch.tensor(1e9, dtype=torch.int) -> 1000000000
_SQRT_INV_T = float(math.sqrt(1.0 / TEMPERATURE))


def _round_up(x, m):
    return ((x + m - 1) // m) * m


def _prep_kernel(z1_ref, z2_ref, h1_ref, h2_ref, pos_ref):
    """Normalize (F.normalize, eps=1e-12), fold sqrt(1/T), emit bf16 + f32 pos."""
    z1 = z1_ref[...].astype(jnp.float32)
    z2 = z2_ref[...].astype(jnp.float32)
    scale = jnp.float32(_SQRT_INV_T)
    # rsqrt(max(ss, 1e-24)) == 1 / max(||z||, 1e-12)  (matches F.normalize).
    s1 = lax.rsqrt(jnp.maximum(jnp.sum(z1 * z1, axis=-1, keepdims=True), 1e-24)) * scale
    s2 = lax.rsqrt(jnp.maximum(jnp.sum(z2 * z2, axis=-1, keepdims=True), 1e-24)) * scale
    h1 = z1 * s1
    h2 = z2 * s2
    # bf16 operands for the MXU fast path (accumulation in kernel 2 stays f32).
    h1_ref[...] = h1.astype(jnp.bfloat16)
    h2_ref[...] = h2.astype(jnp.bfloat16)
    # Positive logits (h1n_i . h2n_i)/T kept in f32 (both halves carry sqrt(1/T)).
    # Zero-padded rows produce 0 and therefore contribute nothing to the loss.
    pos_ref[...] = jnp.sum(h1 * h2, axis=-1, keepdims=True)


def _lse_kernel(hq_ref, hk_ref, lse_ref, *, t_rows, half_rows, b_valid):
    """One query tile: bf16 Gram matmul vs all keys + masked row logsumexp."""
    i = pl.program_id(0)
    hq = hq_ref[...]                      # (TQ, DP)  bf16 query tile
    hk = hk_ref[...]                      # (NP, DP)  bf16 keys, resident
    # bf16 x bf16 -> f32 accumulate on the MXU; contraction on the last dim of
    # BOTH operands so no transposed operand is materialized.
    s = lax.dot_general(hq, hk, dimension_numbers=(((1,), (1,)), ((), ())),
                        preferred_element_type=jnp.float32)      # (TQ, NP) f32
    tq, nk = s.shape
    row0 = i * t_rows
    row = row0 + lax.broadcasted_iota(jnp.int32, (tq, nk), 0)
    col = lax.broadcasted_iota(jnp.int32, (tq, nk), 1)
    mask = col == row                     # self-similarity (aa/bb diagonal)
    if b_valid != half_rows:              # zero-padded key rows (batch padding)
        col_h = jnp.where(col < half_rows, col, col - half_rows)
        mask = mask | (col_h >= b_valid)
    # Scalar fill (not `s - LARGE_NUM`): one fewer full-tile VPU pass and no
    # extra (TQ, NP) temporary; numerically identical (exp(-1e9 - m) == 0).
    s = jnp.where(mask, jnp.float32(-LARGE_NUM), s)
    m = jnp.max(s, axis=1, keepdims=True)
    # TODO(synk): optional bf16 exp on v6e/v7x (EUP bf16 path); keep f32 on v5e.
    lse = m + jnp.log(jnp.sum(jnp.exp(s - m), axis=1, keepdims=True))  # (TQ, 1)
    if b_valid != half_rows:              # drop padded query rows from the sum
        r = row0 + lax.broadcasted_iota(jnp.int32, (tq, 1), 0)
        r_h = jnp.where(r < half_rows, r, r - half_rows)
        lse = jnp.where(r_h < b_valid, lse, 0.0)
    lse_ref[...] = lse


def ntxent_loss(zis, zjs):
    """NT-Xent loss. zis, zjs: (batch, dim) float32. Returns scalar float32."""
    b, d = zis.shape

    # Lane-dense feature dim (zero columns change neither norms nor dots).
    dp = _round_up(max(d, 128), 128)
    if dp != d:
        zis = jnp.pad(zis, ((0, 0), (0, dp - d)))
        zjs = jnp.pad(zjs, ((0, 0), (0, dp - d)))

    # Query-tile rows: sublane aligned; capped at 256 so that the (TQ, 2B)
    # logits tile plus the resident bf16 keys stay inside v7x's 64 MiB VMEM
    # at SimCLR-scale batches.
    t_rows = 256 if b >= 256 else _round_up(b, 8)
    bp = _round_up(b, t_rows)
    if bp != b:
        zis = jnp.pad(zis, ((0, bp - b), (0, 0)))
        zjs = jnp.pad(zjs, ((0, bp - b), (0, 0)))
    np_rows = 2 * bp

    # ---- kernel 1: normalize + fold 1/T + bf16 cast + f32 positive logits ----
    h1, h2, pos = pl.pallas_call(
        _prep_kernel,
        grid=(bp // t_rows,),
        in_specs=[pl.BlockSpec((t_rows, dp), lambda i: (i, 0)),
                  pl.BlockSpec((t_rows, dp), lambda i: (i, 0))],
        out_specs=[pl.BlockSpec((t_rows, dp), lambda i: (i, 0)),
                   pl.BlockSpec((t_rows, dp), lambda i: (i, 0)),
                   pl.BlockSpec((t_rows, 1), lambda i: (i, 0))],
        out_shape=[jax.ShapeDtypeStruct((bp, dp), jnp.bfloat16),
                   jax.ShapeDtypeStruct((bp, dp), jnp.bfloat16),
                   jax.ShapeDtypeStruct((bp, 1), jnp.float32)],
        compiler_params=pltpu.CompilerParams(dimension_semantics=("parallel",)),
    )(zis, zjs)

    # Wrapper-side concat: layout plumbing done once in HBM (no per-step copy).
    h = jnp.concatenate([h1, h2], axis=0)          # (2*BP, DP) bf16

    # Explicit VMEM budget: resident bf16 keys + double-buffered bf16 query
    # tiles + f32 logits tile and temporaries.  Clamp to [32 MiB, 64 MiB]
    # (<= physical on v5e/v6e/v7x, above v5e's 16 MiB default scoped limit).
    est = (2 * np_rows * dp * 2            # keys (allow double buffering)
           + 2 * 2 * t_rows * dp           # query tiles, bf16, double-buffered
           + 4 * t_rows * np_rows * 4      # logits tile + temporaries
           + (1 << 20))
    vmem_limit = int(min(max(est, 32 * 1024 * 1024), 64 * 1024 * 1024))

    kernel = functools.partial(_lse_kernel, t_rows=t_rows, half_rows=bp, b_valid=b)
    lse = pl.pallas_call(
        kernel,
        grid=(np_rows // t_rows,),
        in_specs=[pl.BlockSpec((t_rows, dp), lambda i: (i, 0)),     # query tile
                  pl.BlockSpec((np_rows, dp), lambda i: (0, 0))],   # all keys
        out_specs=pl.BlockSpec((t_rows, 1), lambda i: (i, 0)),
        out_shape=jax.ShapeDtypeStruct((np_rows, 1), jnp.float32),
        compiler_params=pltpu.CompilerParams(
            dimension_semantics=("parallel",),       # v7x: 2 TCs split the tiles
            vmem_limit_bytes=vmem_limit),
    )(h, h)

    # loss_a + loss_b: each valid row contributes (lse - pos); every positive
    # pair is the target of one loss_a row and one loss_b row.
    return jnp.sum(lse) - 2.0 * jnp.sum(pos)


def _reference_loss(zis, zjs):
    """Pure-JAX reference (mirrors the PyTorch module) for correctness checking."""
    def norm(x):
        return x / jnp.maximum(jnp.linalg.norm(x, axis=-1, keepdims=True), 1e-12)

    h1, h2 = norm(zis), norm(zjs)
    b = h1.shape[0]
    eye = jnp.eye(b, dtype=jnp.float32)
    laa = h1 @ h1.T / TEMPERATURE - eye * LARGE_NUM
    lbb = h2 @ h2.T / TEMPERATURE - eye * LARGE_NUM
    lab = h1 @ h2.T / TEMPERATURE
    lba = h2 @ h1.T / TEMPERATURE
    labels = jnp.arange(b)

    def ce_sum(logits):
        lse = jax.nn.logsumexp(logits, axis=1)
        tgt = logits[jnp.arange(b), labels]
        return jnp.sum(lse - tgt)

    return ce_sum(jnp.concatenate([lab, laa], axis=1)) + \
           ce_sum(jnp.concatenate([lba, lbb], axis=1))


if __name__ == "__main__":
    batch, dim = 8, 32
    key = jax.random.PRNGKey(0)
    k1, k2 = jax.random.split(key)
    zis = jax.random.normal(k1, (batch, dim), dtype=jnp.float32)
    zjs = jax.random.normal(k2, (batch, dim), dtype=jnp.float32)

    loss = ntxent_loss(zis, zjs)
    jax.block_until_ready(loss)

    ref = _reference_loss(zis, zjs)
    # bf16 matmul operands (f32 accumulate, f32 positives) introduce ~0.3-1%
    # rounding on the negative logits; tolerance relaxed accordingly.
    assert jnp.allclose(loss, ref, rtol=2e-2, atol=1e-2), (loss, ref)

    print("KERNEL_OK")
</pallas_src>

<mosaic_0001>
module attributes {stable_mosaic.version = 11 : i64} {
  func.func @_prep_kernel(%arg0: i32, %arg1: memref<8x128xf32, #tpu.memory_space<vmem>>, %arg2: memref<8x128xf32, #tpu.memory_space<vmem>>, %arg3: memref<8x128xbf16, #tpu.memory_space<vmem>>, %arg4: memref<8x128xbf16, #tpu.memory_space<vmem>>, %arg5: memref<8x1xf32, #tpu.memory_space<vmem>>) attributes {dimension_semantics = [#tpu.dimension_semantics<parallel>], iteration_bounds = array<i64: 1>, scalar_prefetch = 0 : i64, scratch_operands = 0 : i64, tpu.core_type = #tpu.core_type<tc>, window_params = [{transform_indices = @transform_0, window_bounds = array<i64: 8, 128>}, {transform_indices = @transform_1, window_bounds = array<i64: 8, 128>}, {transform_indices = @transform_2, window_bounds = array<i64: 8, 128>}, {transform_indices = @transform_3, window_bounds = array<i64: 8, 128>}, {transform_indices = @transform_4, window_bounds = array<i64: 8, 1>}]} {
    %c0 = arith.constant 0 : index
    %c0_0 = arith.constant 0 : index
    %0 = vector.load %arg1[%c0, %c0_0] : memref<8x128xf32, #tpu.memory_space<vmem>>, vector<8x128xf32>
    %c0_1 = arith.constant 0 : index
    %c0_2 = arith.constant 0 : index
    %1 = vector.load %arg2[%c0_1, %c0_2] : memref<8x128xf32, #tpu.memory_space<vmem>>, vector<8x128xf32>
    %2 = arith.mulf %0, %0 : vector<8x128xf32>
    %cst = arith.constant dense<0.000000e+00> : vector<8xf32>
    %3 = vector.multi_reduction <add>, %2, %cst [1] : vector<8x128xf32> to vector<8xf32>
    %4 = vector.shape_cast %3 : vector<8xf32> to vector<8x1xf32>
    %cst_3 = arith.constant 1.000000e-24 : f32
    %5 = vector.broadcast %cst_3 : f32 to vector<8x1xf32>
    %6 = arith.maximumf %4, %5 : vector<8x1xf32>
    %7 = math.rsqrt %6 : vector<8x1xf32>
    %cst_4 = arith.constant 3.1622777 : f32
    %8 = vector.broadcast %cst_4 : f32 to vector<8x1xf32>
    %9 = arith.mulf %7, %8 : vector<8x1xf32>
    %10 = arith.mulf %1, %1 : vector<8x128xf32>
    %cst_5 = arith.constant dense<0.000000e+00> : vector<8xf32>
    %11 = vector.multi_reduction <add>, %10, %cst_5 [1] : vector<8x128xf32> to vector<8xf32>
    %12 = vector.shape_cast %11 : vector<8xf32> to vector<8x1xf32>
    %cst_6 = arith.constant 1.000000e-24 : f32
    %13 = vector.broadcast %cst_6 : f32 to vector<8x1xf32>
    %14 = arith.maximumf %12, %13 : vector<8x1xf32>
    %15 = math.rsqrt %14 : vector<8x1xf32>
    %cst_7 = arith.constant 3.1622777 : f32
    %16 = vector.broadcast %cst_7 : f32 to vector<8x1xf32>
    %17 = arith.mulf %15, %16 : vector<8x1xf32>
    %18 = vector.broadcast %9 : vector<8x1xf32> to vector<8x128xf32>
    %19 = arith.mulf %0, %18 : vector<8x128xf32>
    %20 = vector.broadcast %17 : vector<8x1xf32> to vector<8x128xf32>
    %21 = arith.mulf %1, %20 : vector<8x128xf32>
    %22 = arith.truncf %19 : vector<8x128xf32> to vector<8x128xbf16>
    %c0_8 = arith.constant 0 : index
    %c0_9 = arith.constant 0 : index
    %23 = vector.load %arg3[%c0_8, %c0_9] : memref<8x128xbf16, #tpu.memory_space<vmem>>, vector<8x128xbf16>
    tpu.vector_store %arg3[%c0_8, %c0_9], %22 {strides = array<i32>} : memref<8x128xbf16, #tpu.memory_space<vmem>>, vector<8x128xbf16>,
    %24 = arith.truncf %21 : vector<8x128xf32> to vector<8x128xbf16>
    %c0_10 = arith.constant 0 : index
    %c0_11 = arith.constant 0 : index
    %25 = vector.load %arg4[%c0_10, %c0_11] : memref<8x128xbf16, #tpu.memory_space<vmem>>, vector<8x128xbf16>
    tpu.vector_store %arg4[%c0_10, %c0_11], %24 {strides = array<i32>} : memref<8x128xbf16, #tpu.memory_space<vmem>>, vector<8x128xbf16>,
    %26 = arith.mulf %19, %21 : vector<8x128xf32>
    %cst_12 = arith.constant dense<0.000000e+00> : vector<8xf32>
    %27 = vector.multi_reduction <add>, %26, %cst_12 [1] : vector<8x128xf32> to vector<8xf32>
    %28 = vector.shape_cast %27 : vector<8xf32> to vector<8x1xf32>
    %c0_13 = arith.constant 0 : index
    %c0_14 = arith.constant 0 : index
    %29 = vector.load %arg5[%c0_13, %c0_14] : memref<8x1xf32, #tpu.memory_space<vmem>>, vector<8x1xf32>
    tpu.vector_store %arg5[%c0_13, %c0_14], %28 {strides = array<i32>} : memref<8x1xf32, #tpu.memory_space<vmem>>, vector<8x1xf32>,
    return
  }
  func.func @transform_0(%arg0: i32) -> (i32, i32) {
    %c0_i32 = arith.constant 0 : i32
    %c0_i32_0 = arith.constant 0 : i32
    return %arg0, %c0_i32 : i32, i32
  }
  func.func @transform_1(%arg0: i32) -> (i32, i32) {
    %c0_i32 = arith.constant 0 : i32
    %c0_i32_0 = arith.constant 0 : i32
    return %arg0, %c0_i32 : i32, i32
  }
  func.func @transform_2(%arg0: i32) -> (i32, i32) {
    %c0_i32 = arith.constant 0 : i32
    %c0_i32_0 = arith.constant 0 : i32
    return %arg0, %c0_i32 : i32, i32
  }
  func.func @transform_3(%arg0: i32) -> (i32, i32) {
    %c0_i32 = arith.constant 0 : i32
    %c0_i32_0 = arith.constant 0 : i32
    return %arg0, %c0_i32 : i32, i32
  }
  func.func @transform_4(%arg0: i32) -> (i32, i32) {
    %c0_i32 = arith.constant 0 : i32
    %c0_i32_0 = arith.constant 0 : i32
    return %arg0, %c0_i32 : i32, i32
  }
}

</mosaic_0001>

<llo_original>
// kernel: tpu_custom_call.1
$region0: #{tpu_custom_call.1}
  #allocation0 [shape = 'u32[]', space=smem, size = 0x4, offset = 0x4, fixed_abs, tag = 'smem constant byte address 0x4 - core index']
  #allocation1 [shape = 'u32[144,128]{1,0:T(1,128)}', space=vmem, size = 0x12000, scoped, tag = 'internal scratch']
  %s0 = inlined_call_operand.hbm [shape: f32[8,128], index: 0, kind: input, shape index: {}]
  %s1 = inlined_call_operand.hbm [shape: f32[8,128], index: 1, kind: input, shape index: {}]
  %s2 = inlined_call_operand.hbm [shape: bf16[8,128], index: 2, kind: output, shape index: {0}]
  %s3 = inlined_call_operand.hbm [shape: bf16[8,128], index: 3, kind: output, shape index: {1}]
  %s4 = inlined_call_operand.vmem [shape: f32[8,1], index: 4, kind: output, shape index: {2}]
  %5 = xla_tuple %s2, %s3, %s4
  %s6 = sld [smem:[#allocation0]]
  $region42: #{tpu_custom_call.1} parent=0
    _
  %s8 = ssub.s32 1, %s6
  %s9 = scalar_select 0, %s8, %s6
  $region1: #{tpu_custom_call.1} parent=0
    #allocation2 [shape = 'u8[4096]{0}', space=vmem, size = 0x1000, scoped, tag = 'input window, operand 0, single buffered']
    #allocation3 [shape = 's32[1]{0}', space=sflag, size = 0x4, scoped, tag = 'scoped memory for tpu_custom_call.1']
    #allocation4 [shape = 's32[1]{0}', space=sflag, size = 0x4, scoped, tag = 'scoped memory for tpu_custom_call.1']
    #allocation5 [shape = 'u8[4096]{0}', space=vmem, size = 0x1000, scoped, tag = 'input window, operand 1, single buffered']
    #allocation6 [shape = 's32[1]{0}', space=sflag, size = 0x4, scoped, tag = 'scoped memory for tpu_custom_call.1']
    #allocation7 [shape = 'u8[2048]{0}', space=vmem, size = 0x800, scoped, tag = 'output window, operand 0, single buffered']
    #allocation8 [shape = 'u8[2048]{0}', space=vmem, size = 0x800, scoped, tag = 'output window, operand 1, single buffered']
    #allocation9 [shape = 's32[1]{0}', space=sflag, size = 0x4, scoped, tag = 'scoped memory for tpu_custom_call.1']
    %10 = vsyncpa [#allocation3], 0
    %11 = vsyncpa [#allocation6], 0
    %12 = vsyncpa [#allocation4], 0
    %13 = vsyncpa [#allocation9], 0
    // Predicated region
    $region2: #{tpu_custom_call.1} parent=1 // pred_check
      _
    $region3: #{tpu_custom_call.1} parent=1 // pred_check_branch
      %15 = sbr.rel (0) target = $region5
    $region4: #{tpu_custom_call.1} parent=1 // pred_region
      %s17 = ssub.s32 128, 128
      %18 = vsyncadd [#allocation3], %s17
      %s20 = sshll.u32 [#allocation2], 4
      %s21 = int_to_ptr.vmem [resolvable:$true] %s20
      %23 = dma.hbm_to_vmem [thread:$0]  %s0, 128, %s21, [#allocation3]
    $region5: #{tpu_custom_call.1} parent=1 // pred_fallthru
      _
    // Predicated region
    $region6: #{tpu_custom_call.1} parent=1 // pred_check
      _
    $region7: #{tpu_custom_call.1} parent=1 // pred_check_branch
      %25 = sbr.rel (0) target = $region9
    $region8: #{tpu_custom_call.1} parent=1 // pred_region
      %s27 = ssub.s32 128, 128
      %28 = vsyncadd [#allocation6], %s27
      %s30 = sshll.u32 [#allocation5], 4
      %s31 = int_to_ptr.vmem [resolvable:$true] %s30
      %33 = dma.hbm_to_vmem [thread:$0]  %s1, 128, %s31, [#allocation6]
    $region9: #{tpu_custom_call.1} parent=1 // pred_fallthru
      _
    // Predicated region
    $region10: #{tpu_custom_call.1} parent=1 // pred_check
      _
    $region11: #{tpu_custom_call.1} parent=1 // pred_check_branch
      %35 = sbr.rel (0) target = $region13
    $region12: #{tpu_custom_call.1} parent=1 // pred_region
      %36 = dma.done [#allocation3], 128
    $region13: #{tpu_custom_call.1} parent=1 // pred_fallthru
      _
    // Predicated region
    $region14: #{tpu_custom_call.1} parent=1 // pred_check
      _
    $region15: #{tpu_custom_call.1} parent=1 // pred_check_branch
      %38 = sbr.rel (0) target = $region17
    $region16: #{tpu_custom_call.1} parent=1 // pred_region
      %39 = dma.done [#allocation6], 128
    $region17: #{tpu_custom_call.1} parent=1 // pred_fallthru
      _
    %v40 = vld [vmem:[#allocation2] sm:$0xff]
    %v41 = vld [vmem:[#allocation5] sm:$0xff]
    %v42 = vmul.f32 %v40, %v40
    %43 = vadd.xlane.f32.xlu0 %v42
    %v44 = vpop.xlane.xlu0 %43
    %v45 = vmax.f32 %v44, 1e-24
    %v46 = vrsqrt.pop %v45
    %v47 = vmul.f32 %v46, 3.1622777
    %v48 = vmul.f32 %v41, %v41
    %49 = vadd.xlane.f32.xlu0 %v48
    %v50 = vpop.xlane.xlu0 %49
    %v51 = vmax.f32 %v50, 1e-24
    %v52 = vrsqrt.pop %v51
    %v53 = vmul.f32 %v52, 3.1622777
    %v54 = vmul.f32 %v40, %v47
    %v55 = vmul.f32 %v41, %v53
    %v56 = vpack.c.bf16 %v54, %v54
    %57 = vst [vmem:[#allocation7] sm:$0xf] %v56
    %v58 = vpack.c.bf16 %v55, %v55
    %59 = vst [vmem:[#allocation8] sm:$0xf] %v58
    %v60 = vmul.f32 %v54, %v55
    %61 = vadd.xlane.f32.xlu0 %v60
    %v62 = vpop.xlane.xlu0 %61
    %vm63 = vcmask 7168
    %64 = vst.msk [vmem:[%s4] sm:$0xff] %vm63, %v62
    // Predicated region
    $region18: #{tpu_custom_call.1} parent=1 // pred_check
      _
    $region19: #{tpu_custom_call.1} parent=1 // pred_check_branch
      %66 = sbr.rel (0) target = $region21
    $region20: #{tpu_custom_call.1} parent=1 // pred_region
      %s68 = ssub.s32 64, 64
      %69 = vsyncadd [#allocation4], %s68
      %s71 = sshll.u32 [#allocation7], 4
      %s72 = int_to_ptr.vmem [resolvable:$true] %s71
      %74 = dma.vmem_to_hbm [thread:$0]  %s72, 64, %s2, [#allocation4]
    $region21: #{tpu_custom_call.1} parent=1 // pred_fallthru
      _
    // Predicated region
    $region22: #{tpu_custom_call.1} parent=1 // pred_check
      _
    $region23: #{tpu_custom_call.1} parent=1 // pred_check_branch
      %76 = sbr.rel (0) target = $region25
    $region24: #{tpu_custom_call.1} parent=1 // pred_region
      %s78 = ssub.s32 64, 64
      %79 = vsyncadd [#allocation9], %s78
      %s81 = sshll.u32 [#allocation8], 4
      %s82 = int_to_ptr.vmem [resolvable:$true] %s81
      %84 = dma.vmem_to_hbm [thread:$0]  %s82, 64, %s3, [#allocation9]
    $region25: #{tpu_custom_call.1} parent=1 // pred_fallthru
      _
    // Predicated region
    $region26: #{tpu_custom_call.1} parent=1 // pred_check
      _
    $region27: #{tpu_custom_call.1} parent=1 // pred_check_branch
      %86 = sbr.rel (0) target = $region29
    $region28: #{tpu_custom_call.1} parent=1 // pred_region
      _
    $region29: #{tpu_custom_call.1} parent=1 // pred_fallthru
      _
    // Predicated region
    $region30: #{tpu_custom_call.1} parent=1 // pred_check
      _
    $region31: #{tpu_custom_call.1} parent=1 // pred_check_branch
      %88 = sbr.rel (0) target = $region33
    $region32: #{tpu_custom_call.1} parent=1 // pred_region
      %89 = dma.done [#allocation4], 64
    $region33: #{tpu_custom_call.1} parent=1 // pred_fallthru
      _
    // Predicated region
    $region34: #{tpu_custom_call.1} parent=1 // pred_check
      _
    $region35: #{tpu_custom_call.1} parent=1 // pred_check_branch
      %91 = sbr.rel (0) target = $region37
    $region36: #{tpu_custom_call.1} parent=1 // pred_region
      %92 = dma.done [#allocation9], 64
    $region37: #{tpu_custom_call.1} parent=1 // pred_fallthru
      _
    // Predicated region
    $region38: #{tpu_custom_call.1} parent=1 // pred_check
      _
    $region39: #{tpu_custom_call.1} parent=1 // pred_check_branch
      %94 = sbr.rel (0) target = $region41
    $region40: #{tpu_custom_call.1} parent=1 // pred_region
      _
    $region41: #{tpu_custom_call.1} parent=1 // pred_fallthru
      _
    %95 = vsyncpa [#allocation3], 1
    %96 = vsyncpa [#allocation6], 1
    %97 = vsyncpa [#allocation4], 1
    %98 = vsyncpa [#allocation9], 1

</llo_original>
